<compile_context>
chip_gen: v6e
topology: v6e:2x2x1
jax: 0.10.0
libtpu: 0.0.40
codegen_flags: <defaults>
</compile_context>

<pallas_src>
import functools

import jax
import jax.numpy as jnp
from jax.experimental import pallas as pl
from jax.experimental.pallas import tpu as pltpu

LANE = 128
_DEFAULT_VMEM_BYTES = 64 << 20  # conservative (v7x per-TC) fallback


def _round_up(x, m):
    return (x + m - 1) // m * m


def _pad_feature(d):
    # Tiny dims: keep as-is (padding 32 -> 128 would inflate weight bytes and
    # FLOPs 16x while the kernel is DMA/step-overhead bound anyway).
    # Larger dims: pad to 128 lanes for MXU alignment / lane-dense stores.
    return d if d < LANE else _round_up(d, LANE)


def _vmem_capacity_bytes():
    try:
        info = pltpu.get_tpu_info()
        return int(getattr(info, "vmem_capacity_bytes", _DEFAULT_VMEM_BYTES))
    except Exception:
        return _DEFAULT_VMEM_BYTES


def _mlp_kernel(x_ref, w1_ref, b1_ref, w2_ref, b2_ref, w3_ref, b3_ref, out_ref):
    # fc1 + relu: bf16 operands, f32 MXU accumulation, bias+relu on the VPU.
    h1 = jnp.dot(x_ref[...], w1_ref[...], preferred_element_type=jnp.float32)
    h1 = jnp.maximum(h1 + b1_ref[...], 0.0).astype(w2_ref.dtype)
    # fc2 + relu
    h2 = jnp.dot(h1, w2_ref[...], preferred_element_type=jnp.float32)
    h2 = jnp.maximum(h2 + b2_ref[...], 0.0).astype(w3_ref.dtype)
    # output layer (no activation); f32 store
    out_ref[...] = (
        jnp.dot(h2, w3_ref[...], preferred_element_type=jnp.float32) + b3_ref[...]
    )


def init_params(key, input_size, hidden_size, num_game_actions, num_players):
    """nn.Linear-style U(-1/sqrt(fan_in)) init. Weights stored as (in, out)."""
    out_dim = num_game_actions * num_players
    ks = jax.random.split(key, 6)

    def linear(kw, kb, fan_in, fan_out):
        bound = 1.0 / jnp.sqrt(fan_in)
        w = jax.random.uniform(kw, (fan_in, fan_out), jnp.float32, -bound, bound)
        b = jax.random.uniform(kb, (1, fan_out), jnp.float32, -bound, bound)
        return w, b

    w1, b1 = linear(ks[0], ks[1], input_size, hidden_size)
    w2, b2 = linear(ks[2], ks[3], hidden_size, hidden_size)
    w3, b3 = linear(ks[4], ks[5], hidden_size, out_dim)
    return (w1, b1, w2, b2, w3, b3)


def prepare_params(params, compute_dtype=jnp.bfloat16):
    """One-time pad + cast of the weights (call once, NOT per forward).

    Weights are cast to `compute_dtype` (bf16 by default); biases stay f32
    because they are added to the f32 accumulator inside the kernel.
    """
    w1, b1, w2, b2, w3, b3 = params
    in_dim, hid = w1.shape
    out_dim = w3.shape[1]
    in_p, hid_p, out_p = _pad_feature(in_dim), _pad_feature(hid), _pad_feature(out_dim)

    def pad2(a, r, c, dtype):
        return jnp.pad(a, ((0, r - a.shape[0]), (0, c - a.shape[1]))).astype(dtype)

    return (
        pad2(w1, in_p, hid_p, compute_dtype),
        pad2(b1, 1, hid_p, jnp.float32),
        pad2(w2, hid_p, hid_p, compute_dtype),
        pad2(b2, 1, hid_p, jnp.float32),
        pad2(w3, hid_p, out_p, compute_dtype),
        pad2(b3, 1, out_p, jnp.float32),
    )


@functools.partial(jax.jit, static_argnums=(2, 3))
def agent_policy_forward(x, prepared_params, num_game_actions, num_players):
    """x: (B, input_size) f32. Returns (B, num_game_actions, num_players) f32."""
    w1p, b1p, w2p, b2p, w3p, b3p = prepared_params
    B, in_dim = x.shape
    in_p, hid_p = w1p.shape
    out_p = w3p.shape[1]
    out_dim = num_game_actions * num_players
    assert out_dim <= out_p
    cdt = w1p.dtype
    wbytes = jnp.dtype(cdt).itemsize

    vmem_cap = _vmem_capacity_bytes()
    # Larger batch tiles on 128 MiB parts (v5e/v6e); 256 on v7x (64 MiB per TC).
    tb_max = 512 if vmem_cap >= (96 << 20) else 256

    # Remainder-aware batch tiling: split B into near-equal tiles so an awkward
    # batch size (e.g. 257) does not pad up to ~2x the work.
    sub = 16 if cdt == jnp.bfloat16 else 8
    if B <= tb_max:
        n_tiles = 1
        TB = _round_up(B, sub)
    else:
        n_tiles = -(-B // tb_max)              # cdiv
        TB = _round_up(-(-B // n_tiles), sub)  # near-equal tile, sublane aligned
    B_p = TB * n_tiles

    xp = jnp.pad(x, ((0, B_p - B), (0, in_p - in_dim))).astype(cdt)

    # Resident weights/biases: constant index_map + single buffer (a block that
    # never changes does not need double buffering).
    def resident(a):
        return pl.BlockSpec(a.shape, lambda i: (0, 0), pipeline_mode=pl.Buffered(1))

    # VMEM accounting: streamed x/out double-buffered, weights/biases single-
    # buffered, plus f32 intermediates and their bf16 casts.
    vmem_bytes = (
        2 * TB * in_p * wbytes
        + 2 * TB * out_p * 4
        + (in_p * hid_p + hid_p * hid_p + hid_p * out_p) * wbytes
        + (2 * hid_p + out_p) * 4
        + 2 * TB * hid_p * (4 + wbytes)
    )
    headroom = 8 << 20
    # Leave room for Mosaic internal scratch: ~50 MiB budget on v7x (64 MiB/TC),
    # ~100 MiB on v5e/v6e (128 MiB physical).
    budget = int(vmem_cap * 0.78)
    vmem_limit = int(max(min(vmem_bytes + headroom, budget), 1 << 20))

    flops = 2 * B_p * (in_p * hid_p + hid_p * hid_p + hid_p * out_p)
    bytes_accessed = (
        B_p * in_p * wbytes
        + B_p * out_p * 4
        + (in_p * hid_p + hid_p * hid_p + hid_p * out_p) * wbytes
        + (2 * hid_p + out_p) * 4
    )

    out_padded = pl.pallas_call(
        _mlp_kernel,
        out_shape=jax.ShapeDtypeStruct((B_p, out_p), jnp.float32),
        grid=(n_tiles,),
        in_specs=[
            pl.BlockSpec((TB, in_p), lambda i: (i, 0)),  # streamed x tile
            resident(w1p), resident(b1p),
            resident(w2p), resident(b2p),
            resident(w3p), resident(b3p),
        ],
        out_specs=pl.BlockSpec((TB, out_p), lambda i: (i, 0)),
        compiler_params=pltpu.CompilerParams(
            dimension_semantics=("parallel",),
            vmem_limit_bytes=vmem_limit,
        ),
        cost_estimate=pl.CostEstimate(
            flops=int(flops), transcendentals=0, bytes_accessed=int(bytes_accessed)
        ),
    )(xp, w1p, b1p, w2p, b2p, w3p, b3p)

    # Drop padded rows/cols, then mirror torch's .view(-1, A, P) (row-major).
    action_values = out_padded[:B, :out_dim]
    return action_values.reshape(-1, num_game_actions, num_players)


if __name__ == "__main__":
    # Small shapes consistent with the module's forward.
    batch = 2
    input_size = 32
    hidden_size = 32
    num_game_actions = 4
    num_players = 8

    key = jax.random.PRNGKey(0)
    k_x, k_p = jax.random.split(key)

    x = jax.random.normal(k_x, (batch, input_size), jnp.float32)
    params = init_params(k_p, input_size, hidden_size, num_game_actions, num_players)

    # Pad + cast the weights once (outside the per-call forward).
    prepared = jax.block_until_ready(prepare_params(params))

    out = agent_policy_forward(x, prepared, num_game_actions, num_players)
    out = jax.block_until_ready(out)

    # Pure-JAX f32 reference of the same math (kernel computes in bf16, so a
    # loosened tolerance is expected per the review).
    w1, b1, w2, b2, w3, b3 = params
    h1 = jnp.maximum(x @ w1 + b1, 0.0)
    h2 = jnp.maximum(h1 @ w2 + b2, 0.0)
    ref = (h2 @ w3 + b3).reshape(-1, num_game_actions, num_players)

    assert out.shape == (batch, num_game_actions, num_players)
    max_err = float(jnp.max(jnp.abs(out - ref)))
    assert jnp.allclose(out, ref, atol=5e-2, rtol=5e-2), max_err

    print("KERNEL_OK")
</pallas_src>

<mosaic_0001>
module attributes {stable_mosaic.version = 11 : i64} {
  func.func @_mlp_kernel(%arg0: i32, %arg1: memref<16x32xbf16, #tpu.memory_space<vmem>>, %arg2: memref<32x32xbf16, #tpu.memory_space<vmem>>, %arg3: memref<1x32xf32, #tpu.memory_space<vmem>>, %arg4: memref<32x32xbf16, #tpu.memory_space<vmem>>, %arg5: memref<1x32xf32, #tpu.memory_space<vmem>>, %arg6: memref<32x32xbf16, #tpu.memory_space<vmem>>, %arg7: memref<1x32xf32, #tpu.memory_space<vmem>>, %arg8: memref<16x32xf32, #tpu.memory_space<vmem>>) attributes {dimension_semantics = [#tpu.dimension_semantics<parallel>], iteration_bounds = array<i64: 1>, scalar_prefetch = 0 : i64, scratch_operands = 0 : i64, tpu.core_type = #tpu.core_type<tc>, window_params = [{transform_indices = @transform_0, window_bounds = array<i64: 16, 32>}, {pipeline_mode = #tpu.pipeline_mode<synchronous>, transform_indices = @transform_1, window_bounds = array<i64: 32, 32>}, {pipeline_mode = #tpu.pipeline_mode<synchronous>, transform_indices = @transform_2, window_bounds = array<i64: 1, 32>}, {pipeline_mode = #tpu.pipeline_mode<synchronous>, transform_indices = @transform_3, window_bounds = array<i64: 32, 32>}, {pipeline_mode = #tpu.pipeline_mode<synchronous>, transform_indices = @transform_4, window_bounds = array<i64: 1, 32>}, {pipeline_mode = #tpu.pipeline_mode<synchronous>, transform_indices = @transform_5, window_bounds = array<i64: 32, 32>}, {pipeline_mode = #tpu.pipeline_mode<synchronous>, transform_indices = @transform_6, window_bounds = array<i64: 1, 32>}, {transform_indices = @transform_7, window_bounds = array<i64: 16, 32>}]} {
    %c0 = arith.constant 0 : index
    %c0_0 = arith.constant 0 : index
    %0 = vector.load %arg1[%c0, %c0_0] : memref<16x32xbf16, #tpu.memory_space<vmem>>, vector<16x32xbf16>
    %c0_1 = arith.constant 0 : index
    %c0_2 = arith.constant 0 : index
    %1 = vector.load %arg2[%c0_1, %c0_2] : memref<32x32xbf16, #tpu.memory_space<vmem>>, vector<32x32xbf16>
    %cst = arith.constant dense<0.000000e+00> : vector<16x32xf32>
    %2 = tpu.matmul %0, %1, %cst {dimension_numbers = #tpu.dot_dimension_numbers<[1], [0], [0], [1], [0, 0, 1, 1], [], []>} : vector<16x32xbf16>, vector<32x32xbf16>, vector<16x32xf32> -> vector<16x32xf32>
    %c0_3 = arith.constant 0 : index
    %c0_4 = arith.constant 0 : index
    %3 = vector.load %arg3[%c0_3, %c0_4] : memref<1x32xf32, #tpu.memory_space<vmem>>, vector<1x32xf32>
    %4 = vector.broadcast %3 : vector<1x32xf32> to vector<16x32xf32>
    %5 = arith.addf %2, %4 : vector<16x32xf32>
    %cst_5 = arith.constant 0.000000e+00 : f32
    %6 = vector.broadcast %cst_5 : f32 to vector<16x32xf32>
    %7 = arith.maximumf %5, %6 : vector<16x32xf32>
    %8 = arith.truncf %7 : vector<16x32xf32> to vector<16x32xbf16>
    %c0_6 = arith.constant 0 : index
    %c0_7 = arith.constant 0 : index
    %9 = vector.load %arg4[%c0_6, %c0_7] : memref<32x32xbf16, #tpu.memory_space<vmem>>, vector<32x32xbf16>
    %cst_8 = arith.constant dense<0.000000e+00> : vector<16x32xf32>
    %10 = tpu.matmul %8, %9, %cst_8 {dimension_numbers = #tpu.dot_dimension_numbers<[1], [0], [0], [1], [0, 0, 1, 1], [], []>} : vector<16x32xbf16>, vector<32x32xbf16>, vector<16x32xf32> -> vector<16x32xf32>
    %c0_9 = arith.constant 0 : index
    %c0_10 = arith.constant 0 : index
    %11 = vector.load %arg5[%c0_9, %c0_10] : memref<1x32xf32, #tpu.memory_space<vmem>>, vector<1x32xf32>
    %12 = vector.broadcast %11 : vector<1x32xf32> to vector<16x32xf32>
    %13 = arith.addf %10, %12 : vector<16x32xf32>
    %cst_11 = arith.constant 0.000000e+00 : f32
    %14 = vector.broadcast %cst_11 : f32 to vector<16x32xf32>
    %15 = arith.maximumf %13, %14 : vector<16x32xf32>
    %16 = arith.truncf %15 : vector<16x32xf32> to vector<16x32xbf16>
    %c0_12 = arith.constant 0 : index
    %c0_13 = arith.constant 0 : index
    %17 = vector.load %arg6[%c0_12, %c0_13] : memref<32x32xbf16, #tpu.memory_space<vmem>>, vector<32x32xbf16>
    %cst_14 = arith.constant dense<0.000000e+00> : vector<16x32xf32>
    %18 = tpu.matmul %16, %17, %cst_14 {dimension_numbers = #tpu.dot_dimension_numbers<[1], [0], [0], [1], [0, 0, 1, 1], [], []>} : vector<16x32xbf16>, vector<32x32xbf16>, vector<16x32xf32> -> vector<16x32xf32>
    %c0_15 = arith.constant 0 : index
    %c0_16 = arith.constant 0 : index
    %19 = vector.load %arg7[%c0_15, %c0_16] : memref<1x32xf32, #tpu.memory_space<vmem>>, vector<1x32xf32>
    %20 = vector.broadcast %19 : vector<1x32xf32> to vector<16x32xf32>
    %21 = arith.addf %18, %20 : vector<16x32xf32>
    %c0_17 = arith.constant 0 : index
    %c0_18 = arith.constant 0 : index
    %22 = vector.load %arg8[%c0_17, %c0_18] : memref<16x32xf32, #tpu.memory_space<vmem>>, vector<16x32xf32>
    tpu.vector_store %arg8[%c0_17, %c0_18], %21 {strides = array<i32>} : memref<16x32xf32, #tpu.memory_space<vmem>>, vector<16x32xf32>,
    return
  }
  func.func @transform_0(%arg0: i32) -> (i32, i32) {
    %c0_i32 = arith.constant 0 : i32
    %c0_i32_0 = arith.constant 0 : i32
    return %arg0, %c0_i32 : i32, i32
  }
  func.func @transform_1(%arg0: i32) -> (i32, i32) {
    %c0_i32 = arith.constant 0 : i32
    %c0_i32_0 = arith.constant 0 : i32
    %c0_i32_1 = arith.constant 0 : i32
    return %c0_i32, %c0_i32_0 : i32, i32
  }
  func.func @transform_2(%arg0: i32) -> (i32, i32) {
    %c0_i32 = arith.constant 0 : i32
    %c0_i32_0 = arith.constant 0 : i32
    %c0_i32_1 = arith.constant 0 : i32
    return %c0_i32, %c0_i32_0 : i32, i32
  }
  func.func @transform_3(%arg0: i32) -> (i32, i32) {
    %c0_i32 = arith.constant 0 : i32
    %c0_i32_0 = arith.constant 0 : i32
    %c0_i32_1 = arith.constant 0 : i32
    return %c0_i32, %c0_i32_0 : i32, i32
  }
  func.func @transform_4(%arg0: i32) -> (i32, i32) {
    %c0_i32 = arith.constant 0 : i32
    %c0_i32_0 = arith.constant 0 : i32
    %c0_i32_1 = arith.constant 0 : i32
    return %c0_i32, %c0_i32_0 : i32, i32
  }
  func.func @transform_5(%arg0: i32) -> (i32, i32) {
    %c0_i32 = arith.constant 0 : i32
    %c0_i32_0 = arith.constant 0 : i32
    %c0_i32_1 = arith.constant 0 : i32
    return %c0_i32, %c0_i32_0 : i32, i32
  }
  func.func @transform_6(%arg0: i32) -> (i32, i32) {
    %c0_i32 = arith.constant 0 : i32
    %c0_i32_0 = arith.constant 0 : i32
    %c0_i32_1 = arith.constant 0 : i32
    return %c0_i32, %c0_i32_0 : i32, i32
  }
  func.func @transform_7(%arg0: i32) -> (i32, i32) {
    %c0_i32 = arith.constant 0 : i32
    %c0_i32_0 = arith.constant 0 : i32
    return %arg0, %c0_i32 : i32, i32
  }
}

</mosaic_0001>

<llo_original>
// kernel: agent_policy_forward.1
$region0: #{agent_policy_forward.1}
  #allocation0 [shape = 'u32[]', space=smem, size = 0x4, offset = 0x4, fixed_abs, tag = 'smem constant byte address 0x4 - core index']
  #allocation1 [shape = 'u32[144,128]{1,0:T(1,128)}', space=vmem, size = 0x12000, scoped, tag = 'internal scratch']
  %s0 = inlined_call_operand.vmem [shape: bf16[16,32], index: 0, kind: input, shape index: {}]
  %s1 = inlined_call_operand.hbm [shape: bf16[32,32], index: 1, kind: input, shape index: {}]
  %s2 = inlined_call_operand.vmem [shape: f32[1,32], index: 2, kind: input, shape index: {}]
  %s3 = inlined_call_operand.vmem [shape: bf16[32,32], index: 3, kind: input, shape index: {}]
  %s4 = inlined_call_operand.vmem [shape: f32[1,32], index: 4, kind: input, shape index: {}]
  %s5 = inlined_call_operand.hbm [shape: bf16[32,32], index: 5, kind: input, shape index: {}]
  %s6 = inlined_call_operand.vmem [shape: f32[1,32], index: 6, kind: input, shape index: {}]
  %s7 = inlined_call_operand.vmem [shape: f32[16,32], index: 7, kind: output, shape index: {}]
  %s8 = sld [smem:[#allocation0]]
  $region46: #{agent_policy_forward.1} parent=0
    _
  %s10 = ssub.s32 1, %s8
  %s11 = scalar_select 0, %s10, %s8
  $region1: #{agent_policy_forward.1} parent=0
    #allocation2 [shape = 'u8[8192]{0}', space=vmem, size = 0x2000, scoped, tag = 'input window, operand 1, single buffered']
    #allocation3 [shape = 's32[1]{0}', space=sflag, size = 0x4, scoped, tag = 'scoped memory for agent_policy_forward.1']
    #allocation4 [shape = 'u8[8192]{0}', space=vmem, size = 0x2000, scoped, tag = 'input window, operand 5, single buffered']
    #allocation5 [shape = 's32[1]{0}', space=sflag, size = 0x4, scoped, tag = 'scoped memory for agent_policy_forward.1']
    %12 = vsyncpa [#allocation3], 0
    %13 = vsyncpa [#allocation5], 0
    // Predicated region
    $region2: #{agent_policy_forward.1} parent=1 // pred_check
      _
    $region3: #{agent_policy_forward.1} parent=1 // pred_check_branch
      %15 = sbr.rel (0) target = $region5
    $region4: #{agent_policy_forward.1} parent=1 // pred_region
      _
    $region5: #{agent_policy_forward.1} parent=1 // pred_fallthru
      _
    // Predicated region
    $region6: #{agent_policy_forward.1} parent=1 // pred_check
      _
    $region7: #{agent_policy_forward.1} parent=1 // pred_check_branch
      %17 = sbr.rel (0) target = $region9
    $region8: #{agent_policy_forward.1} parent=1 // pred_region
      %s19 = ssub.s32 256, 256
      %20 = vsyncadd [#allocation3], %s19
      %s21 = sshll.u32 [#allocation2], 4
      %s22 = int_to_ptr.vmem [resolvable:$true] %s21
      %27 = dma.hbm_to_vmem [thread:$0]  %s1, 256, %s22, [#allocation3], 64, 64, 4
    $region9: #{agent_policy_forward.1} parent=1 // pred_fallthru
      _
    // Predicated region
    $region10: #{agent_policy_forward.1} parent=1 // pred_check
      _
    $region11: #{agent_policy_forward.1} parent=1 // pred_check_branch
      %29 = sbr.rel (0) target = $region13
    $region12: #{agent_policy_forward.1} parent=1 // pred_region
      _
    $region13: #{agent_policy_forward.1} parent=1 // pred_fallthru
      _
    // Predicated region
    $region14: #{agent_policy_forward.1} parent=1 // pred_check
      _
    $region15: #{agent_policy_forward.1} parent=1 // pred_check_branch
      %31 = sbr.rel (0) target = $region17
    $region16: #{agent_policy_forward.1} parent=1 // pred_region
      _
    $region17: #{agent_policy_forward.1} parent=1 // pred_fallthru
      _
    // Predicated region
    $region18: #{agent_policy_forward.1} parent=1 // pred_check
      _
    $region19: #{agent_policy_forward.1} parent=1 // pred_check_branch
      %33 = sbr.rel (0) target = $region21
    $region20: #{agent_policy_forward.1} parent=1 // pred_region
      _
    $region21: #{agent_policy_forward.1} parent=1 // pred_fallthru
      _
    // Predicated region
    $region22: #{agent_policy_forward.1} parent=1 // pred_check
      _
    $region23: #{agent_policy_forward.1} parent=1 // pred_check_branch
      %35 = sbr.rel (0) target = $region25
    $region24: #{agent_policy_forward.1} parent=1 // pred_region
      %s37 = ssub.s32 256, 256
      %38 = vsyncadd [#allocation5], %s37
      %s39 = sshll.u32 [#allocation4], 4
      %s40 = int_to_ptr.vmem [resolvable:$true] %s39
      %45 = dma.hbm_to_vmem [thread:$0]  %s5, 256, %s40, [#allocation5], 64, 64, 4
    $region25: #{agent_policy_forward.1} parent=1 // pred_fallthru
      _
    // Predicated region
    $region26: #{agent_policy_forward.1} parent=1 // pred_check
      _
    $region27: #{agent_policy_forward.1} parent=1 // pred_check_branch
      %47 = sbr.rel (0) target = $region29
    $region28: #{agent_policy_forward.1} parent=1 // pred_region
      _
    $region29: #{agent_policy_forward.1} parent=1 // pred_fallthru
      _
    // Predicated region
    $region30: #{agent_policy_forward.1} parent=1 // pred_check
      _
    $region31: #{agent_policy_forward.1} parent=1 // pred_check_branch
      %49 = sbr.rel (0) target = $region33
    $region32: #{agent_policy_forward.1} parent=1 // pred_region
      %50 = dma.done [#allocation3], 256
    $region33: #{agent_policy_forward.1} parent=1 // pred_fallthru
      _
    // Predicated region
    $region34: #{agent_policy_forward.1} parent=1 // pred_check
      _
    $region35: #{agent_policy_forward.1} parent=1 // pred_check_branch
      %52 = sbr.rel (0) target = $region37
    $region36: #{agent_policy_forward.1} parent=1 // pred_region
      %53 = dma.done [#allocation5], 256
    $region37: #{agent_policy_forward.1} parent=1 // pred_fallthru
      _
    %v55 = vld [vmem:[%s0] sm:$0xf]
    %v56 = vld [vmem:[%s0 + $0x4] sm:$0xf]
    %v57 = vld [vmem:[#allocation2] sm:$0xf]
    %v58 = vld [vmem:[#allocation2 + $0x4] sm:$0xf]
    %v59 = vld [vmem:[#allocation2 + $0x8] sm:$0xf]
    %v60 = vld [vmem:[#allocation2 + $0xc] sm:$0xf]
    %v61 = vld [vmem:[%s2] sm:$0x1]
    %v63 = vlaneseq
    %v64 = vshrl.u32 %v63, 7
    %v65 = vsub.s32 0, %v64
    %v66 = vrot.slane %v61, %v65
    %v70 = vunpack.c.l.b16 %v55
    %v71 = vunpack.c.l.b16 %v56
    %v72 = vpack.c.b16 %v71, %v70
    %v77 = vunpack.c.l.b16 %v57
    %v78 = vunpack.c.l.b16 %v58
    %v79 = vunpack.c.l.b16 %v59
    %v80 = vunpack.c.l.b16 %v60
    %v81 = vpack.c.b16 %v78, %v77
    %v82 = vpack.c.b16 %v80, %v79
    %vm85 = vcmask 261120
    %v87 = vsel %vm85, %v72, 0
    %89 = vmatprep.subr.bf16.mxu0 0
    %90 = vmatpush1.bf16.msra.mxu0 0
    %91 = vmatprep.subr.bf16.mxu0 0
    %92 = vmatpush1.bf16.msra.mxu0 0
    %93 = vmatprep.subr.bf16.mxu0 0
    %94 = vmatpush1.bf16.msra.mxu0 0
    %95 = vmatprep.subr.bf16.mxu0 0
    %96 = vmatpush1.bf16.msra.mxu0 0
    %97 = vmatprep.subr.bf16.mxu0 0
    %98 = vmatpush1.bf16.msra.mxu0 0
    %99 = vmatprep.subr.bf16.mxu0 0
    %100 = vmatpush1.bf16.msra.mxu0 0
    %101 = vmatprep.subr.bf16.mxu0 0
    %102 = vmatpush1.bf16.msra.mxu0 %v82
    %103 = vmatprep.subr.bf16.mxu0 0
    %104 = vmatpush1.bf16.msra.mxu0 %v81
    %105 = vmatprep.subr.bf16.mxu0 0
    %106 = vmatpush2.bf16.msra.mxu0 0
    %107 = vmatprep.subr.bf16.mxu0 0
    %108 = vmatpush2.bf16.msra.mxu0 0
    %109 = vmatprep.subr.bf16.mxu0 0
    %110 = vmatpush2.bf16.msra.mxu0 0
    %111 = vmatprep.subr.bf16.mxu0 0
    %112 = vmatpush2.bf16.msra.mxu0 0
    %113 = vmatprep.subr.bf16.mxu0 0
    %114 = vmatpush2.bf16.msra.mxu0 0
    %115 = vmatprep.subr.bf16.mxu0 0
    %116 = vmatpush2.bf16.msra.mxu0 0
    %117 = vmatprep.subr.bf16.mxu0 0
    %118 = vmatpush2.bf16.msra.mxu0 0
    %119 = vmatprep.subr.bf16.mxu0 0
    %120 = vmatpush2.bf16.msra.mxu0 0
    %121 = vmatprep.mubr.bf16.mxu0 0
    %122 = vmatmul.mubr.bf16.gmra.mxu0 %v87
    %v123 = vpop.f32.mrf.mxu0
    %v124 = vadd.f32 %v66, %v123
    %v125 = vpop.f32.mrf.mxu0
    %v126 = vpop.f32.mrf.mxu0
    %v127 = vadd.f32 %v66, %v126
    %v128 = vpop.f32.mrf.mxu0
    %129 = vdwg.mxu0
    %v130 = vmax.f32 %v124, 0.0
    %v131 = vmax.f32 %v127, 0.0
    %v132 = vpack.c.bf16 %v131, %v130
    %v133 = vld [vmem:[%s3] sm:$0xf]
    %v134 = vld [vmem:[%s3 + $0x4] sm:$0xf]
    %v135 = vld [vmem:[%s3 + $0x8] sm:$0xf]
    %v136 = vld [vmem:[%s3 + $0xc] sm:$0xf]
    %v137 = vld [vmem:[%s4] sm:$0x1]
    %v139 = vlaneseq
    %v140 = vshrl.u32 %v139, 7
    %v141 = vsub.s32 0, %v140
    %v142 = vrot.slane %v137, %v141
    %v148 = vunpack.c.l.b16 %v133
    %v149 = vunpack.c.l.b16 %v134
    %v150 = vunpack.c.l.b16 %v135
    %v151 = vunpack.c.l.b16 %v136
    %v152 = vpack.c.b16 %v149, %v148
    %v153 = vpack.c.b16 %v151, %v150
    %v157 = vsel %vm85, %v132, 0
    %159 = vmatprep.subr.bf16.mxu0 0
    %160 = vmatpush1.bf16.msra.mxu0 0
    %161 = vmatprep.subr.bf16.mxu0 0
    %162 = vmatpush1.bf16.msra.mxu0 0
    %163 = vmatprep.subr.bf16.mxu0 0
    %164 = vmatpush1.bf16.msra.mxu0 0
    %165 = vmatprep.subr.bf16.mxu0 0
    %166 = vmatpush1.bf16.msra.mxu0 0
    %167 = vmatprep.subr.bf16.mxu0 0
    %168 = vmatpush1.bf16.msra.mxu0 0
    %169 = vmatprep.subr.bf16.mxu0 0
    %170 = vmatpush1.bf16.msra.mxu0 0
    %171 = vmatprep.subr.bf16.mxu0 0
    %172 = vmatpush1.bf16.msra.mxu0 %v153
    %173 = vmatprep.subr.bf16.mxu0 0
    %174 = vmatpush1.bf16.msra.mxu0 %v152
    %175 = vmatprep.subr.bf16.mxu0 0
    %176 = vmatpush2.bf16.msra.mxu0 0
    %177 = vmatprep.subr.bf16.mxu0 0
    %178 = vmatpush2.bf16.msra.mxu0 0
    %179 = vmatprep.subr.bf16.mxu0 0
    %180 = vmatpush2.bf16.msra.mxu0 0
    %181 = vmatprep.subr.bf16.mxu0 0
    %182 = vmatpush2.bf16.msra.mxu0 0
    %183 = vmatprep.subr.bf16.mxu0 0
    %184 = vmatpush2.bf16.msra.mxu0 0
    %185 = vmatprep.subr.bf16.mxu0 0
    %186 = vmatpush2.bf16.msra.mxu0 0
    %187 = vmatprep.subr.bf16.mxu0 0
    %188 = vmatpush2.bf16.msra.mxu0 0
    %189 = vmatprep.subr.bf16.mxu0 0
    %190 = vmatpush2.bf16.msra.mxu0 0
    %191 = vmatprep.mubr.bf16.mxu0 0
    %192 = vmatmul.mubr.bf16.gmra.mxu0 %v157
    %v193 = vpop.f32.mrf.mxu0
    %v194 = vadd.f32 %v142, %v193
    %v195 = vpop.f32.mrf.mxu0
    %v196 = vpop.f32.mrf.mxu0
    %v197 = vadd.f32 %v142, %v196
    %v198 = vpop.f32.mrf.mxu0
    %199 = vdwg.mxu0
    %v200 = vmax.f32 %v194, 0.0
    %v201 = vmax.f32 %v197, 0.0
    %v202 = vpack.c.bf16 %v201, %v200
    %v203 = vld [vmem:[#allocation4] sm:$0xf]
    %v204 = vld [vmem:[#allocation4 + $0x4] sm:$0xf]
    %v205 = vld [vmem:[#allocation4 + $0x8] sm:$0xf]
    %v206 = vld [vmem:[#allocation4 + $0xc] sm:$0xf]
    %v207 = vld [vmem:[%s6] sm:$0x1]
    %v209 = vlaneseq
    %v210 = vshrl.u32 %v209, 7
    %v211 = vsub.s32 0, %v210
    %v212 = vrot.slane %v207, %v211
    %v218 = vunpack.c.l.b16 %v203
    %v219 = vunpack.c.l.b16 %v204
    %v220 = vunpack.c.l.b16 %v205
    %v221 = vunpack.c.l.b16 %v206
    %v222 = vpack.c.b16 %v219, %v218
    %v223 = vpack.c.b16 %v221, %v220
    %v227 = vsel %vm85, %v202, 0
    %229 = vmatprep.subr.bf16.mxu0 0
    %230 = vmatpush1.bf16.msra.mxu0 0
    %231 = vmatprep.subr.bf16.mxu0 0
    %232 = vmatpush1.bf16.msra.mxu0 0
    %233 = vmatprep.subr.bf16.mxu0 0
    %234 = vmatpush1.bf16.msra.mxu0 0
    %235 = vmatprep.subr.bf16.mxu0 0
    %236 = vmatpush1.bf16.msra.mxu0 0
    %237 = vmatprep.subr.bf16.mxu0 0
    %238 = vmatpush1.bf16.msra.mxu0 0
    %239 = vmatprep.subr.bf16.mxu0 0
    %240 = vmatpush1.bf16.msra.mxu0 0
    %241 = vmatprep.subr.bf16.mxu0 0
    %242 = vmatpush1.bf16.msra.mxu0 %v223
    %243 = vmatprep.subr.bf16.mxu0 0
    %244 = vmatpush1.bf16.msra.mxu0 %v222
    %245 = vmatprep.subr.bf16.mxu0 0
    %246 = vmatpush2.bf16.msra.mxu0 0
    %247 = vmatprep.subr.bf16.mxu0 0
    %248 = vmatpush2.bf16.msra.mxu0 0
    %249 = vmatprep.subr.bf16.mxu0 0
    %250 = vmatpush2.bf16.msra.mxu0 0
    %251 = vmatprep.subr.bf16.mxu0 0
    %252 = vmatpush2.bf16.msra.mxu0 0
    %253 = vmatprep.subr.bf16.mxu0 0
    %254 = vmatpush2.bf16.msra.mxu0 0
    %255 = vmatprep.subr.bf16.mxu0 0
    %256 = vmatpush2.bf16.msra.mxu0 0
    %257 = vmatprep.subr.bf16.mxu0 0
    %258 = vmatpush2.bf16.msra.mxu0 0
    %259 = vmatprep.subr.bf16.mxu0 0
    %260 = vmatpush2.bf16.msra.mxu0 0
    %261 = vmatprep.mubr.bf16.mxu0 0
    %262 = vmatmul.mubr.bf16.gmra.mxu0 %v227
    %v263 = vpop.f32.mrf.mxu0
    %v264 = vadd.f32 %v212, %v263
    %v265 = vpop.f32.mrf.mxu0
    %v266 = vpop.f32.mrf.mxu0
    %v267 = vadd.f32 %v212, %v266
    %v268 = vpop.f32.mrf.mxu0
    %269 = vdwg.mxu0
    %270 = vst.msk [vmem:[%s7] sm:$0xff] %vm85, %v264
    %271 = vst.msk [vmem:[%s7 + $0x8] sm:$0xff] %vm85, %v267
    // Predicated region
    $region38: #{agent_policy_forward.1} parent=1 // pred_check
      _
    $region39: #{agent_policy_forward.1} parent=1 // pred_check_branch
      %273 = sbr.rel (0) target = $region41
    $region40: #{agent_policy_forward.1} parent=1 // pred_region
      _
    $region41: #{agent_policy_forward.1} parent=1 // pred_fallthru
      _
    // Predicated region
    $region42: #{agent_policy_forward.1} parent=1 // pred_check
      _
    $region43: #{agent_policy_forward.1} parent=1 // pred_check_branch
      %275 = sbr.rel (0) target = $region45
    $region44: #{agent_policy_forward.1} parent=1 // pred_region
      _
    $region45: #{agent_policy_forward.1} parent=1 // pred_fallthru
      _
    %276 = vsyncpa [#allocation3], 1
    %277 = vsyncpa [#allocation5], 1

</llo_original>
